<compile_context>
chip_gen: v7x
topology: tpu7x:2x2x1
jax: 0.10.0
libtpu: 0.0.40
codegen_flags: <defaults>
</compile_context>

<pallas_src>
import numpy as np
import jax
import jax.numpy as jnp
from jax.experimental import pallas as pl
from jax.experimental.pallas import tpu as pltpu


# ----------------------------- Pallas kernel ------------------------------ #
def _time_embed_kernel(ts_ref, pe_ref, w1_ref, b1_ref, w2_ref, b2_ref, o_ref, x_scr):
    # ts_ref: [B] int32 (SMEM); pe_ref: [max_len, d] (VMEM);
    # w*_ref: [d, d] ([in, out]); b*_ref: [1, d]; o_ref: [1, B, d];
    # x_scr: [B, d] VMEM scratch used to assemble the gathered rows.
    max_len = pe_ref.shape[0]
    B = x_scr.shape[0]

    # Fused gather of the positional-encoding rows (unrolled; B is small & static).
    for i in range(B):
        idx = jnp.clip(ts_ref[i], 0, max_len - 1)          # clamp: no OOB reads
        x_scr[pl.ds(i, 1), :] = pe_ref[pl.ds(idx, 1), :]

    x = x_scr[...]
    h = jnp.dot(x, w1_ref[...], preferred_element_type=jnp.float32) + b1_ref[...]
    h = h * jax.nn.sigmoid(h)                               # SiLU (f32, EUP path)
    y = jnp.dot(h, w2_ref[...], preferred_element_type=jnp.float32) + b2_ref[...]
    o_ref[0] = y.astype(o_ref.dtype)                        # [1, B, d] == permute(1, 0, 2)


def timestep_embedder_forward(timesteps, pe, w1_t, b1, w2_t, b2):
    """timesteps: [B] int32, pe: [max_len, d], w*_t: [d, d] ([in, out]), b*: [1, d]."""
    B = timesteps.shape[0]
    _, d = pe.shape

    return pl.pallas_call(
        _time_embed_kernel,
        out_shape=jax.ShapeDtypeStruct((1, B, d), jnp.float32),
        in_specs=[
            pl.BlockSpec(memory_space=pltpu.MemorySpace.SMEM),   # timesteps (scalars)
            pl.BlockSpec(memory_space=pltpu.MemorySpace.VMEM),   # pe table (whole)
            pl.BlockSpec(memory_space=pltpu.MemorySpace.VMEM),   # w1^T
            pl.BlockSpec(memory_space=pltpu.MemorySpace.VMEM),   # b1 [1, d]
            pl.BlockSpec(memory_space=pltpu.MemorySpace.VMEM),   # w2^T
            pl.BlockSpec(memory_space=pltpu.MemorySpace.VMEM),   # b2 [1, d]
        ],
        out_specs=pl.BlockSpec(memory_space=pltpu.MemorySpace.VMEM),
        scratch_shapes=[pltpu.VMEM((B, d), jnp.float32)],
    )(timesteps, pe, w1_t, b1, w2_t, b2)


# ----------------------- deterministic parameter setup -------------------- #
def build_sinusoidal_pe(max_len, d_model):
    # PyTorch stores pe as [max_len, 1, d]; the singleton dim carries no data,
    # so the kernel-side table is baked as [max_len, d].
    pe = np.zeros((max_len, d_model), dtype=np.float32)
    position = np.arange(0, max_len, dtype=np.float32)[:, None]
    div_term = np.exp(
        np.arange(0, d_model, 2, dtype=np.float32) * (-np.log(10000.0) / d_model)
    )
    pe[:, 0::2] = np.sin(position * div_term)
    pe[:, 1::2] = np.cos(position * div_term)
    return jnp.asarray(pe)  # [max_len, d_model]


def init_params(key, d):
    k1, k2, k3, k4 = jax.random.split(key, 4)
    # PyTorch Linear weight is [out, in]; store transposed [in, out] for the kernel.
    # Biases are baked as [1, d] so no per-call reshape op is needed.
    w1_t = jax.random.normal(k1, (d, d), jnp.float32) * 0.02
    b1 = (jax.random.normal(k2, (d,), jnp.float32) * 0.02).reshape(1, d)
    w2_t = jax.random.normal(k3, (d, d), jnp.float32) * 0.02
    b2 = (jax.random.normal(k4, (d,), jnp.float32) * 0.02).reshape(1, d)
    return w1_t, b1, w2_t, b2


def reference_forward(timesteps, pe, w1_t, b1, w2_t, b2):
    # Faithful PyTorch-shaped reference: pe[timesteps] -> [B, 1, d], MLP, permute.
    pe3 = pe[:, None, :]                    # [max_len, 1, d]
    x = pe3[timesteps]                      # [B, 1, d]
    h = x @ w1_t + b1[0]
    h = h * jax.nn.sigmoid(h)
    y = h @ w2_t + b2[0]                    # [B, 1, d]
    return jnp.transpose(y, (1, 0, 2))      # [1, B, d]


# --------------------------------- main ----------------------------------- #
if __name__ == "__main__":
    latent_dim = 32
    max_len = 64
    batch = 2

    key = jax.random.PRNGKey(0)
    w1_t, b1, w2_t, b2 = init_params(key, latent_dim)
    pe = build_sinusoidal_pe(max_len, latent_dim)

    timesteps = jnp.array([3, 17], dtype=jnp.int32)  # [B]

    out = timestep_embedder_forward(timesteps, pe, w1_t, b1, w2_t, b2)
    out = jax.block_until_ready(out)

    ref = reference_forward(timesteps, pe, w1_t, b1, w2_t, b2)
    assert out.shape == (1, batch, latent_dim), out.shape
    assert np.allclose(np.asarray(out), np.asarray(ref), atol=1e-5, rtol=1e-5)

    print("KERNEL_OK")
</pallas_src>

<mosaic_0001>
module attributes {stable_mosaic.version = 11 : i64} {
  func.func @_time_embed_kernel(%arg0: memref<2xi32, #tpu.memory_space<smem>>, %arg1: memref<64x32xf32, #tpu.memory_space<vmem>>, %arg2: memref<32x32xf32, #tpu.memory_space<vmem>>, %arg3: memref<1x32xf32, #tpu.memory_space<vmem>>, %arg4: memref<32x32xf32, #tpu.memory_space<vmem>>, %arg5: memref<1x32xf32, #tpu.memory_space<vmem>>, %arg6: memref<1x2x32xf32, #tpu.memory_space<vmem>>, %arg7: memref<2x32xf32, #tpu.memory_space<vmem>>) attributes {dimension_semantics = [], scalar_prefetch = 0 : i64, scratch_operands = 1 : i64, tpu.core_type = #tpu.core_type<tc>} {
    %c0 = arith.constant 0 : index
    %0 = memref.load %arg0[%c0] : memref<2xi32, #tpu.memory_space<smem>>
    %c0_i32 = arith.constant 0 : i32
    %c63_i32 = arith.constant 63 : i32
    %1 = arith.maxsi %c0_i32, %0 : i32
    %2 = arith.minsi %c63_i32, %1 : i32
    %3 = arith.index_cast %2 : i32 to index
    %c0_0 = arith.constant 0 : index
    %4 = vector.load %arg1[%3, %c0_0] : memref<64x32xf32, #tpu.memory_space<vmem>>, vector<1x32xf32>
    %c0_1 = arith.constant 0 : index
    %c0_2 = arith.constant 0 : index
    %5 = vector.load %arg7[%c0_1, %c0_2] : memref<2x32xf32, #tpu.memory_space<vmem>>, vector<1x32xf32>
    tpu.vector_store %arg7[%c0_1, %c0_2], %4 {strides = array<i32>} : memref<2x32xf32, #tpu.memory_space<vmem>>, vector<1x32xf32>,
    %c1 = arith.constant 1 : index
    %6 = memref.load %arg0[%c1] : memref<2xi32, #tpu.memory_space<smem>>
    %c0_i32_3 = arith.constant 0 : i32
    %c63_i32_4 = arith.constant 63 : i32
    %7 = arith.maxsi %c0_i32_3, %6 : i32
    %8 = arith.minsi %c63_i32_4, %7 : i32
    %9 = arith.index_cast %8 : i32 to index
    %c0_5 = arith.constant 0 : index
    %10 = vector.load %arg1[%9, %c0_5] : memref<64x32xf32, #tpu.memory_space<vmem>>, vector<1x32xf32>
    %c1_6 = arith.constant 1 : index
    %c0_7 = arith.constant 0 : index
    %11 = vector.load %arg7[%c1_6, %c0_7] : memref<2x32xf32, #tpu.memory_space<vmem>>, vector<1x32xf32>
    tpu.vector_store %arg7[%c1_6, %c0_7], %10 {strides = array<i32>} : memref<2x32xf32, #tpu.memory_space<vmem>>, vector<1x32xf32>,
    %c0_8 = arith.constant 0 : index
    %c0_9 = arith.constant 0 : index
    %12 = vector.load %arg7[%c0_8, %c0_9] : memref<2x32xf32, #tpu.memory_space<vmem>>, vector<2x32xf32>
    %c0_10 = arith.constant 0 : index
    %c0_11 = arith.constant 0 : index
    %13 = vector.load %arg2[%c0_10, %c0_11] : memref<32x32xf32, #tpu.memory_space<vmem>>, vector<32x32xf32>
    %cst = arith.constant dense<0.000000e+00> : vector<2x32xf32>
    %14 = tpu.matmul %12, %13, %cst {dimension_numbers = #tpu.dot_dimension_numbers<[1], [0], [0], [1], [0, 0, 1, 1], [], []>} : vector<2x32xf32>, vector<32x32xf32>, vector<2x32xf32> -> vector<2x32xf32>
    %c0_12 = arith.constant 0 : index
    %c0_13 = arith.constant 0 : index
    %15 = vector.load %arg3[%c0_12, %c0_13] : memref<1x32xf32, #tpu.memory_space<vmem>>, vector<1x32xf32>
    %16 = vector.broadcast %15 : vector<1x32xf32> to vector<2x32xf32>
    %17 = arith.addf %14, %16 : vector<2x32xf32>
    %18 = arith.negf %17 : vector<2x32xf32>
    %19 = math.exp %18 : vector<2x32xf32>
    %cst_14 = arith.constant 1.000000e+00 : f32
    %20 = vector.broadcast %cst_14 : f32 to vector<2x32xf32>
    %21 = arith.addf %20, %19 : vector<2x32xf32>
    %22 = arith.divf %20, %21 : vector<2x32xf32>
    %23 = arith.mulf %17, %22 : vector<2x32xf32>
    %c0_15 = arith.constant 0 : index
    %c0_16 = arith.constant 0 : index
    %24 = vector.load %arg4[%c0_15, %c0_16] : memref<32x32xf32, #tpu.memory_space<vmem>>, vector<32x32xf32>
    %cst_17 = arith.constant dense<0.000000e+00> : vector<2x32xf32>
    %25 = tpu.matmul %23, %24, %cst_17 {dimension_numbers = #tpu.dot_dimension_numbers<[1], [0], [0], [1], [0, 0, 1, 1], [], []>} : vector<2x32xf32>, vector<32x32xf32>, vector<2x32xf32> -> vector<2x32xf32>
    %c0_18 = arith.constant 0 : index
    %c0_19 = arith.constant 0 : index
    %26 = vector.load %arg5[%c0_18, %c0_19] : memref<1x32xf32, #tpu.memory_space<vmem>>, vector<1x32xf32>
    %27 = vector.broadcast %26 : vector<1x32xf32> to vector<2x32xf32>
    %28 = arith.addf %25, %27 : vector<2x32xf32>
    %c0_20 = arith.constant 0 : index
    %c0_21 = arith.constant 0 : index
    %c0_22 = arith.constant 0 : index
    %29 = vector.load %arg6[%c0_20, %c0_21, %c0_22] : memref<1x2x32xf32, #tpu.memory_space<vmem>>, vector<1x2x32xf32>
    %30 = vector.shape_cast %29 : vector<1x2x32xf32> to vector<2x32xf32>
    %31 = vector.shape_cast %28 : vector<2x32xf32> to vector<1x2x32xf32>
    tpu.vector_store %arg6[%c0_20, %c0_21, %c0_22], %31 {strides = array<i32>} : memref<1x2x32xf32, #tpu.memory_space<vmem>>, vector<1x2x32xf32>,
    return
  }
}

</mosaic_0001>

<llo_original>
// kernel: tpu_custom_call.1
$region0: #{tpu_custom_call.1}
  #allocation0 [shape = 'u32[]', space=smem, size = 0x4, offset = 0x4, fixed_abs, tag = 'smem constant byte address 0x4 - core index']
  #allocation1 [shape = 'u32[144,128]{1,0:T(1,128)}', space=vmem, size = 0x12000, scoped, tag = 'internal scratch']
  #allocation2 [shape = 'f32[2,32]{1,0:T(2,128)}', space=vmem, size = 0x400, scoped, tag = 'scratch operand']
  %s0 = inlined_call_operand.vmem [shape: s32[2], index: 0, kind: input, shape index: {}]
  %s1 = inlined_call_operand.vmem [shape: f32[64,32], index: 1, kind: input, shape index: {}]
  %s2 = inlined_call_operand.vmem [shape: f32[32,32], index: 2, kind: input, shape index: {}]
  %s3 = inlined_call_operand.vmem [shape: f32[1,32], index: 3, kind: input, shape index: {}]
  %s4 = inlined_call_operand.vmem [shape: f32[32,32], index: 4, kind: input, shape index: {}]
  %s5 = inlined_call_operand.vmem [shape: f32[1,32], index: 5, kind: input, shape index: {}]
  %s6 = inlined_call_operand.hbm [shape: f32[1,2,32], index: 6, kind: output, shape index: {}]
  %s7 = sld [smem:[#allocation0]]
  $region38: #{tpu_custom_call.1} parent=0
    _
  %s9 = ssub.s32 1, %s7
  %s10 = scalar_select 0, %s9, %s7
  $region1: #{tpu_custom_call.1} parent=0
    #allocation3 [shape = 'u8[512]{0}', space=smem, size = 0x200, scoped, tag = 'input window, operand 0, single buffered']
    #allocation4 [shape = 's32[1]{0}', space=sflag, size = 0x4, scoped, tag = 'scoped memory for tpu_custom_call.1']
    #allocation5 [shape = 's32[1]{0}', space=sflag, size = 0x4, scoped, tag = 'scoped memory for tpu_custom_call.1']
    #allocation6 [shape = 'u8[1024]{0}', space=vmem, size = 0x400, scoped, tag = 'output window, operand 0, single buffered']
    %11 = vsyncpa [#allocation5], 0
    %12 = vsyncpa [#allocation4], 0
    // Predicated region
    $region2: #{tpu_custom_call.1} parent=1 // pred_check
      _
    $region3: #{tpu_custom_call.1} parent=1 // pred_check_branch
      %14 = sbr.rel (0) target = $region5
    $region4: #{tpu_custom_call.1} parent=1 // pred_region
      %s16 = ssub.s32 16, 16
      %17 = vsyncadd [#allocation5], %s16
      %s19 = sshll.u32 %s0, 4
      %s20 = int_to_ptr.vmem [resolvable:$true] %s19
      %22 = dma.vmem_to_smem %s20, 16, [#allocation3], [#allocation5]
    $region5: #{tpu_custom_call.1} parent=1 // pred_fallthru
      _
    // Predicated region
    $region6: #{tpu_custom_call.1} parent=1 // pred_check
      _
    $region7: #{tpu_custom_call.1} parent=1 // pred_check_branch
      %24 = sbr.rel (0) target = $region9
    $region8: #{tpu_custom_call.1} parent=1 // pred_region
      _
    $region9: #{tpu_custom_call.1} parent=1 // pred_fallthru
      _
    // Predicated region
    $region10: #{tpu_custom_call.1} parent=1 // pred_check
      _
    $region11: #{tpu_custom_call.1} parent=1 // pred_check_branch
      %26 = sbr.rel (0) target = $region13
    $region12: #{tpu_custom_call.1} parent=1 // pred_region
      _
    $region13: #{tpu_custom_call.1} parent=1 // pred_fallthru
      _
    // Predicated region
    $region14: #{tpu_custom_call.1} parent=1 // pred_check
      _
    $region15: #{tpu_custom_call.1} parent=1 // pred_check_branch
      %28 = sbr.rel (0) target = $region17
    $region16: #{tpu_custom_call.1} parent=1 // pred_region
      _
    $region17: #{tpu_custom_call.1} parent=1 // pred_fallthru
      _
    // Predicated region
    $region18: #{tpu_custom_call.1} parent=1 // pred_check
      _
    $region19: #{tpu_custom_call.1} parent=1 // pred_check_branch
      %30 = sbr.rel (0) target = $region21
    $region20: #{tpu_custom_call.1} parent=1 // pred_region
      _
    $region21: #{tpu_custom_call.1} parent=1 // pred_fallthru
      _
    // Predicated region
    $region22: #{tpu_custom_call.1} parent=1 // pred_check
      _
    $region23: #{tpu_custom_call.1} parent=1 // pred_check_branch
      %32 = sbr.rel (0) target = $region25
    $region24: #{tpu_custom_call.1} parent=1 // pred_region
      _
    $region25: #{tpu_custom_call.1} parent=1 // pred_fallthru
      _
    // Predicated region
    $region26: #{tpu_custom_call.1} parent=1 // pred_check
      _
    $region27: #{tpu_custom_call.1} parent=1 // pred_check_branch
      %34 = sbr.rel (0) target = $region29
    $region28: #{tpu_custom_call.1} parent=1 // pred_region
      %35 = dma.done [#allocation5], 16
    $region29: #{tpu_custom_call.1} parent=1 // pred_fallthru
      _
    %36 = sfence
    %s37 = sld [smem:[#allocation3]]
    %p38 = scmp.gt.s32.totalorder %s37, 0
    %s39 = scalar_select %p38, %s37, 0
    %p40 = scmp.lt.s32.totalorder %s39, 63
    %s41 = scalar_select %p40, %s39, 63
    %s42 = scalar_lea.vmem %s1, %s41
    %v43 = vld [vmem:[%s42] sm:$0x1]
    %vm44 = vcmask 253952
    %45 = vst.msk [vmem:[#allocation2] sm:$0x1] %vm44, %v43
    %s46 = sld [smem:[#allocation3 + $0x1]]
    %p47 = scmp.gt.s32.totalorder %s46, 0
    %s48 = scalar_select %p47, %s46, 0
    %p49 = scmp.lt.s32.totalorder %s48, 63
    %s50 = scalar_select %p49, %s48, 63
    %s51 = scalar_lea.vmem %s1, %s50
    %v52 = vld [vmem:[%s51] sm:$0x1]
    %53 = vst.msk [vmem:[#allocation2 + $0x1] sm:$0x1] %vm44, %v52
    %v54 = vld [vmem:[#allocation2] sm:$0x3]
    %v55 = vld [vmem:[%s2] sm:$0xff]
    %v56 = vld [vmem:[%s2 + $0x8] sm:$0xff]
    %v57 = vld [vmem:[%s2 + $0x10] sm:$0xff]
    %v58 = vld [vmem:[%s2 + $0x18] sm:$0xff]
    %v59 = vld [vmem:[%s3] sm:$0x1]
    %v61 = vlaneseq
    %v62 = vshrl.u32 %v61, 7
    %v63 = vsub.s32 0, %v62
    %v64 = vrot.slane %v59, %v63
    %vm66 = vcmask 261120
    %v68 = vsel %vm66, %v54, 0
    %70 = vmatprep.subr.mxu0 0.0
    %71 = vmatpush1.msra.mxu0 %v55
    %72 = vmatprep.subr.mxu0 0.0
    %73 = vmatpush1.msra.mxu0 %v56
    %74 = vmatprep.subr.mxu0 0.0
    %75 = vmatpush1.msra.mxu0 %v57
    %76 = vmatprep.subr.mxu0 0.0
    %77 = vmatpush1.msra.mxu0 %v58
    %78 = vmatprep.subr.mxu0 0.0
    %79 = vmatpush1.msra.mxu0 0.0
    %80 = vmatprep.subr.mxu0 0.0
    %81 = vmatpush1.msra.mxu0 0.0
    %82 = vmatprep.subr.mxu0 0.0
    %83 = vmatpush1.msra.mxu0 0.0
    %84 = vmatprep.subr.mxu0 0.0
    %85 = vmatpush1.msra.mxu0 0.0
    %86 = vmatprep.subr.mxu0 0.0
    %87 = vmatpush1.msra.mxu0 0.0
    %88 = vmatprep.subr.mxu0 0.0
    %89 = vmatpush1.msra.mxu0 0.0
    %90 = vmatprep.subr.mxu0 0.0
    %91 = vmatpush1.msra.mxu0 0.0
    %92 = vmatprep.subr.mxu0 0.0
    %93 = vmatpush1.msra.mxu0 0.0
    %94 = vmatprep.subr.mxu0 0.0
    %95 = vmatpush1.msra.mxu0 0.0
    %96 = vmatprep.subr.mxu0 0.0
    %97 = vmatpush1.msra.mxu0 0.0
    %98 = vmatprep.subr.mxu0 0.0
    %99 = vmatpush1.msra.mxu0 0.0
    %100 = vmatprep.subr.mxu0 0.0
    %101 = vmatpush1.msra.mxu0 0.0
    %102 = vmatprep.subr.mxu0 0.0
    %103 = vmatpush1.msra.mxu0 0.0
    %104 = vmatprep.subr.mxu0 0.0
    %105 = vmatpush1.msra.mxu0 0.0
    %106 = vmatprep.subr.mxu0 0.0
    %107 = vmatpush1.msra.mxu0 0.0
    %108 = vmatprep.subr.mxu0 0.0
    %109 = vmatpush1.msra.mxu0 0.0
    %110 = vmatprep.subr.mxu0 0.0
    %111 = vmatpush1.msra.mxu0 0.0
    %112 = vmatprep.subr.mxu0 0.0
    %113 = vmatpush1.msra.mxu0 0.0
    %114 = vmatprep.subr.mxu0 0.0
    %115 = vmatpush1.msra.mxu0 0.0
    %116 = vmatprep.subr.mxu0 0.0
    %117 = vmatpush1.msra.mxu0 0.0
    %118 = vmatprep.subr.mxu0 0.0
    %119 = vmatpush1.msra.mxu0 0.0
    %120 = vmatprep.subr.mxu0 0.0
    %121 = vmatpush1.msra.mxu0 0.0
    %122 = vmatprep.subr.mxu0 0.0
    %123 = vmatpush1.msra.mxu0 0.0
    %124 = vmatprep.subr.mxu0 0.0
    %125 = vmatpush1.msra.mxu0 0.0
    %126 = vmatprep.subr.mxu0 0.0
    %127 = vmatpush1.msra.mxu0 0.0
    %128 = vmatprep.subr.mxu0 0.0
    %129 = vmatpush1.msra.mxu0 0.0
    %130 = vmatprep.subr.mxu0 0.0
    %131 = vmatpush1.msra.mxu0 0.0
    %132 = vmatprep.subr.mxu0 0.0
    %133 = vmatpush1.msra.mxu0 0.0
    %134 = vmatprep.mubr.f32.mxu0 0.0
    %135 = vmatmul.mubr.f32.gmra.mrb[0].mxu0 %v68
    %v136 = vpop.f32.mrb[0].mxu0
    %v137 = vadd.f32 %v64, %v136
    %v138 = vpop.f32.mrb[0].mxu0
    %139 = vdwg.mxu0
    %v140 = vxor.u32 %v137, 2147483648
    %v141 = vmul.f32 %v140, 1.442695
    %v142 = vpow.pop %v141
    %v143 = vadd.f32 %v142, 1.0
    %v144 = vrcp.pop %v143
    %v145 = vmul.f32 1.0, %v144
    %v146 = vmul.f32 %v137, %v145
    %v147 = vld [vmem:[%s4] sm:$0xff]
    %v148 = vld [vmem:[%s4 + $0x8] sm:$0xff]
    %v149 = vld [vmem:[%s4 + $0x10] sm:$0xff]
    %v150 = vld [vmem:[%s4 + $0x18] sm:$0xff]
    %v151 = vld [vmem:[%s5] sm:$0x1]
    %v153 = vlaneseq
    %v154 = vshrl.u32 %v153, 7
    %v155 = vsub.s32 0, %v154
    %v156 = vrot.slane %v151, %v155
    %v159 = vsel %vm66, %v146, 0
    %161 = vmatprep.subr.mxu0 0.0
    %162 = vmatpush1.msra.mxu0 %v147
    %163 = vmatprep.subr.mxu0 0.0
    %164 = vmatpush1.msra.mxu0 %v148
    %165 = vmatprep.subr.mxu0 0.0
    %166 = vmatpush1.msra.mxu0 %v149
    %167 = vmatprep.subr.mxu0 0.0
    %168 = vmatpush1.msra.mxu0 %v150
    %169 = vmatprep.subr.mxu0 0.0
    %170 = vmatpush1.msra.mxu0 0.0
    %171 = vmatprep.subr.mxu0 0.0
    %172 = vmatpush1.msra.mxu0 0.0
    %173 = vmatprep.subr.mxu0 0.0
    %174 = vmatpush1.msra.mxu0 0.0
    %175 = vmatprep.subr.mxu0 0.0
    %176 = vmatpush1.msra.mxu0 0.0
    %177 = vmatprep.subr.mxu0 0.0
    %178 = vmatpush1.msra.mxu0 0.0
    %179 = vmatprep.subr.mxu0 0.0
    %180 = vmatpush1.msra.mxu0 0.0
    %181 = vmatprep.subr.mxu0 0.0
    %182 = vmatpush1.msra.mxu0 0.0
    %183 = vmatprep.subr.mxu0 0.0
    %184 = vmatpush1.msra.mxu0 0.0
    %185 = vmatprep.subr.mxu0 0.0
    %186 = vmatpush1.msra.mxu0 0.0
    %187 = vmatprep.subr.mxu0 0.0
    %188 = vmatpush1.msra.mxu0 0.0
    %189 = vmatprep.subr.mxu0 0.0
    %190 = vmatpush1.msra.mxu0 0.0
    %191 = vmatprep.subr.mxu0 0.0
    %192 = vmatpush1.msra.mxu0 0.0
    %193 = vmatprep.subr.mxu0 0.0
    %194 = vmatpush1.msra.mxu0 0.0
    %195 = vmatprep.subr.mxu0 0.0
    %196 = vmatpush1.msra.mxu0 0.0
    %197 = vmatprep.subr.mxu0 0.0
    %198 = vmatpush1.msra.mxu0 0.0
    %199 = vmatprep.subr.mxu0 0.0
    %200 = vmatpush1.msra.mxu0 0.0
    %201 = vmatprep.subr.mxu0 0.0
    %202 = vmatpush1.msra.mxu0 0.0
    %203 = vmatprep.subr.mxu0 0.0
    %204 = vmatpush1.msra.mxu0 0.0
    %205 = vmatprep.subr.mxu0 0.0
    %206 = vmatpush1.msra.mxu0 0.0
    %207 = vmatprep.subr.mxu0 0.0
    %208 = vmatpush1.msra.mxu0 0.0
    %209 = vmatprep.subr.mxu0 0.0
    %210 = vmatpush1.msra.mxu0 0.0
    %211 = vmatprep.subr.mxu0 0.0
    %212 = vmatpush1.msra.mxu0 0.0
    %213 = vmatprep.subr.mxu0 0.0
    %214 = vmatpush1.msra.mxu0 0.0
    %215 = vmatprep.subr.mxu0 0.0
    %216 = vmatpush1.msra.mxu0 0.0
    %217 = vmatprep.subr.mxu0 0.0
    %218 = vmatpush1.msra.mxu0 0.0
    %219 = vmatprep.subr.mxu0 0.0
    %220 = vmatpush1.msra.mxu0 0.0
    %221 = vmatprep.subr.mxu0 0.0
    %222 = vmatpush1.msra.mxu0 0.0
    %223 = vmatprep.subr.mxu0 0.0
    %224 = vmatpush1.msra.mxu0 0.0
    %225 = vmatprep.mubr.f32.mxu0 0.0
    %226 = vmatmul.mubr.f32.gmra.mrb[0].mxu0 %v159
    %v227 = vpop.f32.mrb[0].mxu0
    %v228 = vadd.f32 %v156, %v227
    %v229 = vpop.f32.mrb[0].mxu0
    %230 = vdwg.mxu0
    %vm231 = vcmask 254976
    %232 = vst.msk [vmem:[#allocation6] sm:$0x3] %vm231, %v228
    // Predicated region
    $region30: #{tpu_custom_call.1} parent=1 // pred_check
      _
    $region31: #{tpu_custom_call.1} parent=1 // pred_check_branch
      %234 = sbr.rel (0) target = $region33
    $region32: #{tpu_custom_call.1} parent=1 // pred_region
      %s236 = ssub.s32 32, 32
      %237 = vsyncadd [#allocation4], %s236
      %s239 = sshll.u32 [#allocation6], 4
      %s240 = int_to_ptr.vmem [resolvable:$true] %s239
      %242 = dma.vmem_to_hbm [thread:$0]  %s240, 32, %s6, [#allocation4]
    $region33: #{tpu_custom_call.1} parent=1 // pred_fallthru
      _
    // Predicated region
    $region34: #{tpu_custom_call.1} parent=1 // pred_check
      _
    $region35: #{tpu_custom_call.1} parent=1 // pred_check_branch
      %244 = sbr.rel (0) target = $region37
    $region36: #{tpu_custom_call.1} parent=1 // pred_region
      %245 = dma.done [#allocation4], 32
    $region37: #{tpu_custom_call.1} parent=1 // pred_fallthru
      _
    %246 = vsyncpa [#allocation4], 1
    %247 = vsyncpa [#allocation5], 1

</llo_original>
